<compile_context>
chip_gen: v6e
topology: v6e:2x2x1
jax: 0.10.0
libtpu: 0.0.40
codegen_flags: <defaults>
</compile_context>

<pallas_src>
import functools

import jax
import jax.numpy as jnp
import numpy as np
from jax.experimental import pallas as pl
from jax.experimental.pallas import tpu as pltpu

LN_EPS = 1e-12  # config.layer_norm_eps (BERT default)


def _round_up(x, m):
    return (x + m - 1) // m * m


def bert_output_kernel(hs_ref, res_ref, w_ref, b_ref, lnw_ref, lnb_ref, out_ref,
                       *, hidden, eps):
    # ---- hoisted (1, Hp) parameter loads (broadcast once per grid step) ----
    b = b_ref[...]            # (1, Hp) f32, zero in padded lanes
    lnw = lnw_ref[...]        # (1, Hp) f32, zero in padded lanes
    lnb = lnb_ref[...]        # (1, Hp) f32, zero in padded lanes

    hp = out_ref.shape[-1]
    n_pad = hp - hidden       # static Python int

    # ---- dense: bf16 operands on the MXU, f32 accumulation ----
    y = jnp.dot(hs_ref[...], w_ref[...], preferred_element_type=jnp.float32)
    # bias + residual in f32 (padded lanes stay exactly 0: 0 + 0 + 0)
    y = y + b + res_ref[...]

    # ---- LayerNorm over the real `hidden` features ----
    inv_h = 1.0 / hidden
    mean = jnp.sum(y, axis=-1, keepdims=True) * inv_h           # pad lanes contribute 0
    centered = y - mean                                         # pad lanes hold (-mean)
    ssq = jnp.sum(centered * centered, axis=-1, keepdims=True)  # includes n_pad * mean^2
    if n_pad:
        ssq = ssq - n_pad * (mean * mean)                       # cheap (tm,1) correction
    var = ssq * inv_h
    norm = centered * jax.lax.rsqrt(var + eps)
    # padded lanes -> 0 because lnw == lnb == 0 there
    out_ref[...] = (norm * lnw + lnb).astype(out_ref.dtype)


def bert_output_pallas(hidden_states, input_tensor, w, b, ln_w, ln_b,
                       *, eps=LN_EPS, tm=128):
    """hidden_states: (..., I), input_tensor: (..., H), w: (I, H), b/ln_w/ln_b: (H,)."""
    orig_shape = input_tensor.shape
    inter = hidden_states.shape[-1]
    hidden = input_tensor.shape[-1]
    rows = int(np.prod(orig_shape[:-1]))

    hs = hidden_states.reshape(rows, inter)
    res = input_tensor.reshape(rows, hidden)

    # lane-dense padding (last dim -> multiple of 128); row padding -> multiple of tile
    ip = _round_up(inter, 128)
    hp = _round_up(hidden, 128)
    tm = min(tm, _round_up(rows, 8))         # don't over-pad tiny inputs
    rp = _round_up(rows, tm)

    hs_p = jnp.zeros((rp, ip), jnp.bfloat16).at[:rows, :inter].set(hs.astype(jnp.bfloat16))
    res_p = jnp.zeros((rp, hp), jnp.float32).at[:rows, :hidden].set(res.astype(jnp.float32))
    w_p = jnp.zeros((ip, hp), jnp.bfloat16).at[:inter, :hidden].set(w.astype(jnp.bfloat16))
    b_p = jnp.zeros((1, hp), jnp.float32).at[0, :hidden].set(b.astype(jnp.float32))
    lnw_p = jnp.zeros((1, hp), jnp.float32).at[0, :hidden].set(ln_w.astype(jnp.float32))
    lnb_p = jnp.zeros((1, hp), jnp.float32).at[0, :hidden].set(ln_b.astype(jnp.float32))

    kernel = functools.partial(bert_output_kernel, hidden=hidden, eps=eps)

    row_map = lambda i: (i, 0)
    const_map = lambda i: (0, 0)

    out = pl.pallas_call(
        kernel,
        out_shape=jax.ShapeDtypeStruct((rp, hp), jnp.float32),
        grid=(rp // tm,),
        in_specs=[
            pl.BlockSpec((tm, ip), row_map),     # activation tile (pipelined over rows)
            pl.BlockSpec((tm, hp), row_map),     # residual tile
            pl.BlockSpec((ip, hp), const_map),   # weight: constant index_map -> VMEM-resident
            pl.BlockSpec((1, hp), const_map),    # dense bias
            pl.BlockSpec((1, hp), const_map),    # LN weight
            pl.BlockSpec((1, hp), const_map),    # LN bias
        ],
        out_specs=pl.BlockSpec((tm, hp), row_map),
        compiler_params=pltpu.CompilerParams(
            dimension_semantics=("parallel",),   # shard row tiles across TCs
        ),
    )(hs_p, res_p, w_p, b_p, lnw_p, lnb_p)

    return out[:rows, :hidden].reshape(orig_shape)


def bert_output_ref(hidden_states, input_tensor, w, b, ln_w, ln_b, eps=LN_EPS):
    # Same precision policy as the kernel: bf16 matmul operands, f32 accumulation,
    # residual + LayerNorm in f32.
    y = jnp.dot(hidden_states.astype(jnp.bfloat16), w.astype(jnp.bfloat16),
                preferred_element_type=jnp.float32)
    y = y + b + input_tensor
    mean = jnp.mean(y, axis=-1, keepdims=True)
    var = jnp.mean((y - mean) ** 2, axis=-1, keepdims=True)
    return (y - mean) * jax.lax.rsqrt(var + eps) * ln_w + ln_b


if __name__ == "__main__":
    # Small shapes consistent with the module: hidden_size=32, intermediate_size=64.
    B, S, H, I = 2, 128, 32, 64

    key = jax.random.PRNGKey(0)
    k1, k2, k3, k4, k5, k6 = jax.random.split(key, 6)
    hidden_states = jax.random.normal(k1, (B, S, I), jnp.float32)   # BertIntermediate output
    input_tensor = jax.random.normal(k2, (B, S, H), jnp.float32)    # residual input
    w = jax.random.normal(k3, (I, H), jnp.float32) * 0.02           # stored (in, out): y = x @ W + b
    b = jax.random.normal(k4, (H,), jnp.float32) * 0.02
    ln_w = 1.0 + 0.1 * jax.random.normal(k5, (H,), jnp.float32)
    ln_b = 0.1 * jax.random.normal(k6, (H,), jnp.float32)

    out = bert_output_pallas(hidden_states, input_tensor, w, b, ln_w, ln_b)
    out = jax.block_until_ready(out)

    ref = jax.block_until_ready(bert_output_ref(hidden_states, input_tensor, w, b, ln_w, ln_b))
    np.testing.assert_allclose(np.asarray(out), np.asarray(ref), rtol=2e-3, atol=2e-3)

    print("KERNEL_OK")
</pallas_src>

<mosaic_0001>
module attributes {stable_mosaic.version = 11 : i64} {
  func.func @bert_output_kernel(%arg0: i32, %arg1: memref<128x128xbf16, #tpu.memory_space<vmem>>, %arg2: memref<128x128xf32, #tpu.memory_space<vmem>>, %arg3: memref<128x128xbf16, #tpu.memory_space<vmem>>, %arg4: memref<1x128xf32, #tpu.memory_space<vmem>>, %arg5: memref<1x128xf32, #tpu.memory_space<vmem>>, %arg6: memref<1x128xf32, #tpu.memory_space<vmem>>, %arg7: memref<128x128xf32, #tpu.memory_space<vmem>>) attributes {dimension_semantics = [#tpu.dimension_semantics<parallel>], iteration_bounds = array<i64: 2>, scalar_prefetch = 0 : i64, scratch_operands = 0 : i64, tpu.core_type = #tpu.core_type<tc>, window_params = [{transform_indices = @transform_0, window_bounds = array<i64: 128, 128>}, {transform_indices = @transform_1, window_bounds = array<i64: 128, 128>}, {pipeline_mode = #tpu.pipeline_mode<synchronous>, transform_indices = @transform_2, window_bounds = array<i64: 128, 128>}, {pipeline_mode = #tpu.pipeline_mode<synchronous>, transform_indices = @transform_3, window_bounds = array<i64: 1, 128>}, {pipeline_mode = #tpu.pipeline_mode<synchronous>, transform_indices = @transform_4, window_bounds = array<i64: 1, 128>}, {pipeline_mode = #tpu.pipeline_mode<synchronous>, transform_indices = @transform_5, window_bounds = array<i64: 1, 128>}, {transform_indices = @transform_6, window_bounds = array<i64: 128, 128>}]} {
    %c0 = arith.constant 0 : index
    %c0_0 = arith.constant 0 : index
    %0 = vector.load %arg4[%c0, %c0_0] : memref<1x128xf32, #tpu.memory_space<vmem>>, vector<1x128xf32>
    %c0_1 = arith.constant 0 : index
    %c0_2 = arith.constant 0 : index
    %1 = vector.load %arg5[%c0_1, %c0_2] : memref<1x128xf32, #tpu.memory_space<vmem>>, vector<1x128xf32>
    %c0_3 = arith.constant 0 : index
    %c0_4 = arith.constant 0 : index
    %2 = vector.load %arg6[%c0_3, %c0_4] : memref<1x128xf32, #tpu.memory_space<vmem>>, vector<1x128xf32>
    %c0_5 = arith.constant 0 : index
    %c0_6 = arith.constant 0 : index
    %3 = vector.load %arg1[%c0_5, %c0_6] : memref<128x128xbf16, #tpu.memory_space<vmem>>, vector<128x128xbf16>
    %c0_7 = arith.constant 0 : index
    %c0_8 = arith.constant 0 : index
    %4 = vector.load %arg3[%c0_7, %c0_8] : memref<128x128xbf16, #tpu.memory_space<vmem>>, vector<128x128xbf16>
    %cst = arith.constant dense<0.000000e+00> : vector<128x128xf32>
    %5 = tpu.matmul %3, %4, %cst {dimension_numbers = #tpu.dot_dimension_numbers<[1], [0], [0], [1], [0, 0, 1, 1], [], []>} : vector<128x128xbf16>, vector<128x128xbf16>, vector<128x128xf32> -> vector<128x128xf32>
    %6 = vector.broadcast %0 : vector<1x128xf32> to vector<128x128xf32>
    %7 = arith.addf %5, %6 : vector<128x128xf32>
    %c0_9 = arith.constant 0 : index
    %c0_10 = arith.constant 0 : index
    %8 = vector.load %arg2[%c0_9, %c0_10] : memref<128x128xf32, #tpu.memory_space<vmem>>, vector<128x128xf32>
    %9 = arith.addf %7, %8 : vector<128x128xf32>
    %cst_11 = arith.constant dense<0.000000e+00> : vector<128xf32>
    %10 = vector.multi_reduction <add>, %9, %cst_11 [1] : vector<128x128xf32> to vector<128xf32>
    %11 = vector.shape_cast %10 : vector<128xf32> to vector<128x1xf32>
    %cst_12 = arith.constant 3.125000e-02 : f32
    %12 = vector.broadcast %cst_12 : f32 to vector<128x1xf32>
    %13 = arith.mulf %11, %12 : vector<128x1xf32>
    %14 = vector.broadcast %13 : vector<128x1xf32> to vector<128x128xf32>
    %15 = arith.subf %9, %14 : vector<128x128xf32>
    %16 = arith.mulf %15, %15 : vector<128x128xf32>
    %cst_13 = arith.constant dense<0.000000e+00> : vector<128xf32>
    %17 = vector.multi_reduction <add>, %16, %cst_13 [1] : vector<128x128xf32> to vector<128xf32>
    %18 = vector.shape_cast %17 : vector<128xf32> to vector<128x1xf32>
    %19 = arith.mulf %13, %13 : vector<128x1xf32>
    %cst_14 = arith.constant 9.600000e+01 : f32
    %20 = vector.broadcast %cst_14 : f32 to vector<128x1xf32>
    %21 = arith.mulf %20, %19 : vector<128x1xf32>
    %22 = arith.subf %18, %21 : vector<128x1xf32>
    %cst_15 = arith.constant 3.125000e-02 : f32
    %23 = vector.broadcast %cst_15 : f32 to vector<128x1xf32>
    %24 = arith.mulf %22, %23 : vector<128x1xf32>
    %cst_16 = arith.constant 9.99999996E-13 : f32
    %25 = vector.broadcast %cst_16 : f32 to vector<128x1xf32>
    %26 = arith.addf %24, %25 : vector<128x1xf32>
    %27 = math.rsqrt %26 : vector<128x1xf32>
    %28 = vector.broadcast %27 : vector<128x1xf32> to vector<128x128xf32>
    %29 = arith.mulf %15, %28 : vector<128x128xf32>
    %30 = vector.broadcast %1 : vector<1x128xf32> to vector<128x128xf32>
    %31 = arith.mulf %29, %30 : vector<128x128xf32>
    %32 = vector.broadcast %2 : vector<1x128xf32> to vector<128x128xf32>
    %33 = arith.addf %31, %32 : vector<128x128xf32>
    %c0_17 = arith.constant 0 : index
    %c0_18 = arith.constant 0 : index
    %34 = vector.load %arg7[%c0_17, %c0_18] : memref<128x128xf32, #tpu.memory_space<vmem>>, vector<128x128xf32>
    tpu.vector_store %arg7[%c0_17, %c0_18], %33 {strides = array<i32>} : memref<128x128xf32, #tpu.memory_space<vmem>>, vector<128x128xf32>,
    return
  }
  func.func @transform_0(%arg0: i32) -> (i32, i32) {
    %c0_i32 = arith.constant 0 : i32
    %c0_i32_0 = arith.constant 0 : i32
    return %arg0, %c0_i32 : i32, i32
  }
  func.func @transform_1(%arg0: i32) -> (i32, i32) {
    %c0_i32 = arith.constant 0 : i32
    %c0_i32_0 = arith.constant 0 : i32
    return %arg0, %c0_i32 : i32, i32
  }
  func.func @transform_2(%arg0: i32) -> (i32, i32) {
    %c0_i32 = arith.constant 0 : i32
    %c0_i32_0 = arith.constant 0 : i32
    %c0_i32_1 = arith.constant 0 : i32
    return %c0_i32, %c0_i32_0 : i32, i32
  }
  func.func @transform_3(%arg0: i32) -> (i32, i32) {
    %c0_i32 = arith.constant 0 : i32
    %c0_i32_0 = arith.constant 0 : i32
    %c0_i32_1 = arith.constant 0 : i32
    return %c0_i32, %c0_i32_0 : i32, i32
  }
  func.func @transform_4(%arg0: i32) -> (i32, i32) {
    %c0_i32 = arith.constant 0 : i32
    %c0_i32_0 = arith.constant 0 : i32
    %c0_i32_1 = arith.constant 0 : i32
    return %c0_i32, %c0_i32_0 : i32, i32
  }
  func.func @transform_5(%arg0: i32) -> (i32, i32) {
    %c0_i32 = arith.constant 0 : i32
    %c0_i32_0 = arith.constant 0 : i32
    %c0_i32_1 = arith.constant 0 : i32
    return %c0_i32, %c0_i32_0 : i32, i32
  }
  func.func @transform_6(%arg0: i32) -> (i32, i32) {
    %c0_i32 = arith.constant 0 : i32
    %c0_i32_0 = arith.constant 0 : i32
    return %arg0, %c0_i32 : i32, i32
  }
}

</mosaic_0001>

<llo_original>
// kernel: tpu_custom_call.1
$region0: #{tpu_custom_call.1}
  #allocation0 [shape = 'u32[]', space=smem, size = 0x4, offset = 0x4, fixed_abs, tag = 'smem constant byte address 0x4 - core index']
  #allocation1 [shape = 'u32[144,128]{1,0:T(1,128)}', space=vmem, size = 0x12000, scoped, tag = 'internal scratch']
  %s0 = inlined_call_operand.hbm [shape: bf16[256,128], index: 0, kind: input, shape index: {}]
  %s1 = inlined_call_operand.hbm [shape: f32[256,128], index: 1, kind: input, shape index: {}]
  %s2 = inlined_call_operand.hbm [shape: bf16[128,128], index: 2, kind: input, shape index: {}]
  %s3 = inlined_call_operand.vmem [shape: f32[1,128], index: 3, kind: input, shape index: {}]
  %s4 = inlined_call_operand.vmem [shape: f32[1,128], index: 4, kind: input, shape index: {}]
  %s5 = inlined_call_operand.vmem [shape: f32[1,128], index: 5, kind: input, shape index: {}]
  %s6 = inlined_call_operand.hbm [shape: f32[256,128], index: 6, kind: output, shape index: {}]
  %s7 = sld [smem:[#allocation0]]
  $region69: #{tpu_custom_call.1} parent=0
    _
  %s9 = ssub.s32 1, %s7
  %s10 = scalar_select 0, %s9, %s7
  $region1: #{tpu_custom_call.1} parent=0
    #allocation2 [shape = 'u8[65536]{0}', space=vmem, size = 0x10000, scoped, tag = 'input window, operand 0']
    #allocation3 [shape = 's32[2]{0}', space=sflag, size = 0x8, scoped, tag = 'scoped memory for tpu_custom_call.1']
    #allocation4 [shape = 's32[2]{0}', space=sflag, size = 0x8, scoped, tag = 'scoped memory for tpu_custom_call.1']
    #allocation5 [shape = 'u8[131072]{0}', space=vmem, size = 0x20000, scoped, tag = 'input window, operand 1']
    #allocation6 [shape = 's32[2]{0}', space=sflag, size = 0x8, scoped, tag = 'scoped memory for tpu_custom_call.1']
    #allocation7 [shape = 'u8[32768]{0}', space=vmem, size = 0x8000, scoped, tag = 'input window, operand 2, single buffered']
    #allocation8 [shape = 'u8[131072]{0}', space=vmem, size = 0x20000, scoped, tag = 'output window, operand 0']
    %11 = vsyncpa [#allocation3], 0
    %s12 = scalar_lea.sflag [#allocation3], 1
    %13 = vsyncpa %s12, 0
    %14 = vsyncpa [#allocation6], 0
    %s15 = scalar_lea.sflag [#allocation6], 1
    %16 = vsyncpa %s15, 0
    %17 = vsyncpa [#allocation4], 0
    %s18 = scalar_lea.sflag [#allocation4], 1
    %19 = vsyncpa %s18, 0
    loop: start=0, step=1, limit=4
    $region2: #{tpu_custom_call.1} parent=1 // loop_pre_header
      _
    $region3: #{tpu_custom_call.1} parent=1 // loop_header
      %s21 = sphi 0, %s25
      %p22 = scmp.ge.s32.totalorder %s21, 4
      %s31 = sphi 0, %s33
      %s34 = sphi 0, %s31
      %s35 = sphi 0, %s34
      %s51 = sphi 0, %s35
      %s57 = sphi 0, %s59
      %s60 = sphi 0, %s57
      %s61 = sphi 0, %s60
      %s77 = sphi 0, %s61
      %s81 = sphi 0, %s81
      %s83 = sphi 0, %s81
      %s84 = sphi 0, %s83
      %s98 = sphi 0, %s84
      %s102 = sphi 0, %s102
      %s104 = sphi 0, %s102
      %s105 = sphi 0, %s104
      %s119 = sphi 0, %s105
      %s123 = sphi 0, %s123
      %s125 = sphi 0, %s123
      %s126 = sphi 0, %s125
      %s140 = sphi 0, %s126
      %s144 = sphi 0, %s144
      %s146 = sphi 0, %s144
      %s147 = sphi 0, %s146
      %s161 = sphi 0, %s147
      %s167 = sphi 0, %s169
      %s170 = sphi 0, %s167
      %s171 = sphi 0, %s170
      %s187 = sphi 0, %s171
    $region4: #{tpu_custom_call.1} parent=1 // loop_header_branch
      %24 = sbr.rel (%p22) target = $region8
    $region5: #{tpu_custom_call.1} parent=1 // loop_body
      %s26 = ssub.s32 %s21, 1
      %s27 = ssub.s32 %s21, 2
      %s28 = sadd.s32 %s21, 1
      %s29 = ssub.s32 %s21, %s28
      %p30 = scmp.eq.s32.totalorder %s29, 0
      %s32 = sadd.s32 %s31, 1
      %s33 = scalar_select %p30, %s31, %s32
      %p36 = pneg %p30
      %p37 = scmp.eq.s32.totalorder %s21, 1
      %p38 = por %p36, %p37
      %p39 = scmp.ne.s32.totalorder %s31, %s34
      %p40 = scmp.eq.s32.totalorder %s21, 0
      %p41 = por %p39, %p40
      %p42 = scmp.ne.s32.totalorder %s31, %s34
      %p43 = scmp.eq.s32.totalorder %s26, 1
      %p44 = por %p42, %p43
      %p45 = scmp.ne.s32.totalorder %s34, %s35
      %p46 = scmp.eq.s32.totalorder %s26, 0
      %p47 = por %p45, %p46
      %p48 = scmp.ne.s32.totalorder %s34, %s35
      %p49 = scmp.eq.s32.totalorder %s27, 1
      %p50 = por %p48, %p49
      %p52 = scmp.ne.s32.totalorder %s35, %s51
      %p53 = scmp.eq.s32.totalorder %s27, 0
      %p54 = por %p52, %p53
      %s55 = ssub.s32 %s21, %s28
      %p56 = scmp.eq.s32.totalorder %s55, 0
      %s58 = sadd.s32 %s57, 1
      %s59 = scalar_select %p56, %s57, %s58
      %p62 = pneg %p56
      %p63 = scmp.eq.s32.totalorder %s21, 1
      %p64 = por %p62, %p63
      %p65 = scmp.ne.s32.totalorder %s57, %s60
      %p66 = scmp.eq.s32.totalorder %s21, 0
      %p67 = por %p65, %p66
      %p68 = scmp.ne.s32.totalorder %s57, %s60
      %p69 = scmp.eq.s32.totalorder %s26, 1
      %p70 = por %p68, %p69
      %p71 = scmp.ne.s32.totalorder %s60, %s61
      %p72 = scmp.eq.s32.totalorder %s26, 0
      %p73 = por %p71, %p72
      %p74 = scmp.ne.s32.totalorder %s60, %s61
      %p75 = scmp.eq.s32.totalorder %s27, 1
      %p76 = por %p74, %p75
      %p78 = scmp.ne.s32.totalorder %s61, %s77
      %p79 = scmp.eq.s32.totalorder %s27, 0
      %p80 = por %p78, %p79
      %s82 = sadd.s32 %s81, 1
      %p85 = scmp.eq.s32.totalorder %s21, 1
      %p86 = scmp.ne.s32.totalorder %s81, %s83
      %p87 = scmp.eq.s32.totalorder %s21, 0
      %p88 = por %p86, %p87
      %p89 = scmp.ne.s32.totalorder %s81, %s83
      %p90 = scmp.eq.s32.totalorder %s26, 1
      %p91 = por %p89, %p90
      %p92 = scmp.ne.s32.totalorder %s83, %s84
      %p93 = scmp.eq.s32.totalorder %s26, 0
      %p94 = por %p92, %p93
      %p95 = scmp.ne.s32.totalorder %s83, %s84
      %p96 = scmp.eq.s32.totalorder %s27, 1
      %p97 = por %p95, %p96
      %p99 = scmp.ne.s32.totalorder %s84, %s98
      %p100 = scmp.eq.s32.totalorder %s27, 0
      %p101 = por %p99, %p100
      %s103 = sadd.s32 %s102, 1
      %p106 = scmp.eq.s32.totalorder %s21, 1
      %p107 = scmp.ne.s32.totalorder %s102, %s104
      %p108 = scmp.eq.s32.totalorder %s21, 0
      %p109 = por %p107, %p108
      %p110 = scmp.ne.s32.totalorder %s102, %s104
      %p111 = scmp.eq.s32.totalorder %s26, 1
      %p112 = por %p110, %p111
      %p113 = scmp.ne.s32.totalorder %s104, %s105
      %p114 = scmp.eq.s32.totalorder %s26, 0
      %p115 = por %p113, %p114
      %p116 = scmp.ne.s32.totalorder %s104, %s105
      %p117 = scmp.eq.s32.totalorder %s27, 1
      %p118 = por %p116, %p117
      %p120 = scmp.ne.s32.totalorder %s105, %s119
      %p121 = scmp.eq.s32.totalorder %s27, 0
      %p122 = por %p120, %p121
      %s124 = sadd.s32 %s123, 1
      %p127 = scmp.eq.s32.totalorder %s21, 1
      %p128 = scmp.ne.s32.totalorder %s123, %s125
      %p129 = scmp.eq.s32.totalorder %s21, 0
      %p130 = por %p128, %p129
      %p131 = scmp.ne.s32.totalorder %s123, %s125
      %p132 = scmp.eq.s32.totalorder %s26, 1
      %p133 = por %p131, %p132
      %p134 = scmp.ne.s32.totalorder %s125, %s126
      %p135 = scmp.eq.s32.totalorder %s26, 0
      %p136 = por %p134, %p135
      %p137 = scmp.ne.s32.totalorder %s125, %s126
      %p138 = scmp.eq.s32.totalorder %s27, 1
      %p139 = por %p137, %p138
      %p141 = scmp.ne.s32.totalorder %s126, %s140
      %p142 = scmp.eq.s32.totalorder %s27, 0
      %p143 = por %p141, %p142
      %s145 = sadd.s32 %s144, 1
      %p148 = scmp.eq.s32.totalorder %s21, 1
      %p149 = scmp.ne.s32.totalorder %s144, %s146
      %p150 = scmp.eq.s32.totalorder %s21, 0
      %p151 = por %p149, %p150
      %p152 = scmp.ne.s32.totalorder %s144, %s146
      %p153 = scmp.eq.s32.totalorder %s26, 1
      %p154 = por %p152, %p153
      %p155 = scmp.ne.s32.totalorder %s146, %s147
      %p156 = scmp.eq.s32.totalorder %s26, 0
      %p157 = por %p155, %p156
      %p158 = scmp.ne.s32.totalorder %s146, %s147
      %p159 = scmp.eq.s32.totalorder %s27, 1
      %p160 = por %p158, %p159
      %p162 = scmp.ne.s32.totalorder %s147, %s161
      %p163 = scmp.eq.s32.totalorder %s27, 0
      %p164 = por %p162, %p163
      %s165 = ssub.s32 %s21, %s28
      %p166 = scmp.eq.s32.totalorder %s165, 0
      %s168 = sadd.s32 %s167, 1
      %s169 = scalar_select %p166, %s167, %s168
      %p172 = pneg %p166
      %p173 = scmp.eq.s32.totalorder %s21, 1
      %p174 = por %p172, %p173
      %p175 = scmp.ne.s32.totalorder %s167, %s170
      %p176 = scmp.eq.s32.totalorder %s21, 0
      %p177 = por %p175, %p176
      %p178 = scmp.ne.s32.totalorder %s167, %s170
      %p179 = scmp.eq.s32.totalorder %s26, 1
      %p180 = por %p178, %p179
      %p181 = scmp.ne.s32.totalorder %s170, %s171
      %p182 = scmp.eq.s32.totalorder %s26, 0
      %p183 = por %p181, %p182
      %p184 = scmp.ne.s32.totalorder %s170, %s171
      %p185 = scmp.eq.s32.totalorder %s27, 1
      %p186 = por %p184, %p185
      %p188 = scmp.ne.s32.totalorder %s171, %s187
      %p189 = scmp.eq.s32.totalorder %s27, 0
      %p190 = por %p188, %p189
      %p191 = scmp.le.s32.totalorder 1, %s21
      %p192 = scmp.lt.s32.totalorder %s21, 3
      %p193 = pnand %p191, %p192
      %p194 = pneg %p193
      // Predicated region
      $region9: #{tpu_custom_call.1} parent=5 // pred_check
        _
      $region10: #{tpu_custom_call.1} parent=5 // pred_check_branch
        %196 = sbr.rel (%p193) target = $region12
      $region11: #{tpu_custom_call.1} parent=5 // pred_region
        %s197 = ssub.s32 %s21, 1
        // Predicated region
        $region13: #{tpu_custom_call.1} parent=11 // pred_check
          %p198 = pneg %p94
        $region14: #{tpu_custom_call.1} parent=11 // pred_check_branch
          %200 = sbr.rel (%p198) target = $region16
        $region15: #{tpu_custom_call.1} parent=11 // pred_region
          %s202 = ssub.s32 1024, 1024
          %203 = vsyncadd [#allocation6], %s202
          %s204 = sshll.u32 [#allocation7], 4
          %s205 = int_to_ptr.vmem [resolvable:$true] %s204
          %210 = dma.hbm_to_vmem [thread:$0]  %s2, 1024, %s205, [#allocation6], 64, 64, 4
        $region16: #{tpu_custom_call.1} parent=11 // pred_fallthru
          _
        // Predicated region
        $region17: #{tpu_custom_call.1} parent=11 // pred_check
          %p211 = pneg %p115
        $region18: #{tpu_custom_call.1} parent=11 // pred_check_branch
          %213 = sbr.rel (%p211) target = $region20
        $region19: #{tpu_custom_call.1} parent=11 // pred_region
          _
        $region20: #{tpu_custom_call.1} parent=11 // pred_fallthru
          _
        // Predicated region
        $region21: #{tpu_custom_call.1} parent=11 // pred_check
          %p214 = pneg %p136
        $region22: #{tpu_custom_call.1} parent=11 // pred_check_branch
          %216 = sbr.rel (%p214) target = $region24
        $region23: #{tpu_custom_call.1} parent=11 // pred_region
          _
        $region24: #{tpu_custom_call.1} parent=11 // pred_fallthru
          _
        // Predicated region
        $region25: #{tpu_custom_call.1} parent=11 // pred_check
          %p217 = pneg %p157
        $region26: #{tpu_custom_call.1} parent=11 // pred_check_branch
          %219 = sbr.rel (%p217) target = $region28
        $region27: #{tpu_custom_call.1} parent=11 // pred_region
          _
        $region28: #{tpu_custom_call.1} parent=11 // pred_fallthru
          _
      $region12: #{tpu_custom_call.1} parent=5 // pred_fallthru
        _
      %p220 = scmp.lt.s32.totalorder %s21, 2
      // Predicated region
      $region29: #{tpu_custom_call.1} parent=5 // pred_check
        %p221 = pneg %p220
      $region30: #{tpu_custom_call.1} parent=5 // pred_check_branch
        %223 = sbr.rel (%p221) target = $region32
      $region31: #{tpu_custom_call.1} parent=5 // pred_region
        // Predicated region
        $region33: #{tpu_custom_call.1} parent=31 // pred_check
          %p224 = pneg %p41
        $region34: #{tpu_custom_call.1} parent=31 // pred_check_branch
          %226 = sbr.rel (%p224) target = $region36
        $region35: #{tpu_custom_call.1} parent=31 // pred_region
          %s227 = sand.u32 %s31, 1
          %s228 = scalar_lea.sflag [#allocation3], %s227
          %s229 = sand.u32 %s31, 1
          %s230 = smul.addr %s229, 64
          %s231 = scalar_lea.vmem [#allocation2], %s230
          %s232 = smul.u32 16, %s21
          %s234 = ssub.s32 1024, 1024
          %235 = vsyncadd %s228, %s234
          %s236 = smul.addr %s232, 64
          %s237 = scalar_lea.hbm %s0, %s236
          %s238 = sshll.u32 %s231, 4
          %s239 = int_to_ptr.vmem [resolvable:$true] %s238
          %244 = dma.hbm_to_vmem [thread:$0]  %s237, 1024, %s239, %s228, 64, 64, 4
        $region36: #{tpu_custom_call.1} parent=31 // pred_fallthru
          _
        // Predicated region
        $region37: #{tpu_custom_call.1} parent=31 // pred_check
          %p245 = pneg %p67
        $region38: #{tpu_custom_call.1} parent=31 // pred_check_branch
          %247 = sbr.rel (%p245) target = $region40
        $region39: #{tpu_custom_call.1} parent=31 // pred_region
          %s248 = sand.u32 %s21, 1
          %s249 = scalar_lea.sflag [#allocation6], %s248
          %s250 = sand.u32 %s57, 1
          %s251 = smul.addr %s250, 128
          %s252 = scalar_lea.vmem [#allocation5], %s251
          %s253 = smul.u32 16, %s21
          %s255 = ssub.s32 2048, 2048
          %256 = vsyncadd %s249, %s255
          %s257 = smul.addr %s253, 128
          %s258 = scalar_lea.hbm %s1, %s257
          %s259 = sshll.u32 %s252, 4
          %s260 = int_to_ptr.vmem [resolvable:$true] %s259
          %265 = dma.hbm_to_vmem [thread:$0]  %s258, 2048, %s260, %s249, 128, 128, 8
        $region40: #{tpu_custom_call.1} parent=31 // pred_fallthru
          _
      $region32: #{tpu_custom_call.1} parent=5 // pred_fallthru
        _
      %p266 = scmp.le.s32.totalorder 1, %s21
      %p267 = scmp.lt.s32.totalorder %s21, 3
      %p268 = pnand %p266, %p267
      %p269 = pneg %p268
      // Predicated region
      $region41: #{tpu_custom_call.1} parent=5 // pred_check
        _
      $region42: #{tpu_custom_call.1} parent=5 // pred_check_branch
        %271 = sbr.rel (%p268) target = $region44
      $region43: #{tpu_custom_call.1} parent=5 // pred_region
        %s272 = ssub.s32 %s21, 1
        %s273 = sand.u32 %s34, 1
        %s274 = scalar_lea.sflag [#allocation3], %s273
        %s275 = sand.u32 %s34, 1
        %s276 = smul.addr %s275, 64
        %s277 = scalar_lea.vmem [#allocation2], %s276
        // Predicated region
        $region45: #{tpu_custom_call.1} parent=43 // pred_check
          %p278 = pneg %p47
        $region46: #{tpu_custom_call.1} parent=43 // pred_check_branch
          %280 = sbr.rel (%p278) target = $region48
        $region47: #{tpu_custom_call.1} parent=43 // pred_region
          %281 = dma.done %s274, 1024
        $region48: #{tpu_custom_call.1} parent=43 // pred_fallthru
          _
        %s282 = sand.u32 %s26, 1
        %s283 = scalar_lea.sflag [#allocation6], %s282
        %s284 = sand.u32 %s60, 1
        %s285 = smul.addr %s284, 128
        %s286 = scalar_lea.vmem [#allocation5], %s285
        // Predicated region
        $region49: #{tpu_custom_call.1} parent=43 // pred_check
          %p287 = pneg %p73
        $region50: #{tpu_custom_call.1} parent=43 // pred_check_branch
          %289 = sbr.rel (%p287) target = $region52
        $region51: #{tpu_custom_call.1} parent=43 // pred_region
          %290 = dma.done %s283, 2048
        $region52: #{tpu_custom_call.1} parent=43 // pred_fallthru
          _
        // Predicated region
        $region53: #{tpu_custom_call.1} parent=43 // pred_check
          %p291 = pneg %p94
        $region54: #{tpu_custom_call.1} parent=43 // pred_check_branch
          %293 = sbr.rel (%p291) target = $region56
        $region55: #{tpu_custom_call.1} parent=43 // pred_region
          %294 = dma.done [#allocation6], 1024
        $region56: #{tpu_custom_call.1} parent=43 // pred_fallthru
          _
        %s295 = sand.u32 %s34, 1
        %s296 = scalar_lea.sflag [#allocation3], %s295
        %s297 = sand.u32 %s34, 1
        %s298 = smul.addr %s297, 64
        %s299 = scalar_lea.vmem [#allocation2], %s298
        %p300 = pneg %p47
        %p301 = pneg %p44
        %s302 = sand.u32 %s26, 1
        %s303 = scalar_lea.sflag [#allocation6], %s302
        %s304 = sand.u32 %s60, 1
        %s305 = smul.addr %s304, 128
        %s306 = scalar_lea.vmem [#allocation5], %s305
        %p307 = pneg %p73
        %p308 = pneg %p70
        %p309 = pneg %p94
        %p310 = pneg %p91
        %p311 = pneg %p115
        %p312 = pneg %p112
        %p313 = pneg %p136
        %p314 = pneg %p133
        %p315 = pneg %p157
        %p316 = pneg %p154
        %p317 = pneg %p183
        %p318 = pneg %p180
        %s319 = sand.u32 %s170, 1
        %s320 = scalar_lea.sflag [#allocation4], %s319
        %s321 = sand.u32 %s170, 1
        %s322 = smul.addr %s321, 128
        %s323 = scalar_lea.vmem [#allocation8], %s322
        %s324 = smul.u32 16, %s26
        %s325 = smul.u32 16, %s26
        %s326 = smul.u32 16, %s26
        %v328 = vld [vmem:[%s3] sm:$0x1]
        %v329 = vld [vmem:[%s4] sm:$0x1]
        %v330 = vld [vmem:[%s5] sm:$0x1]
        %v331 = vld [vmem:[%s277] sm:$0xf]
        %v332 = vld [vmem:[%s277 + $0x4] sm:$0xf]
        %v333 = vld [vmem:[%s277 + $0x8] sm:$0xf]
        %v334 = vld [vmem:[%s277 + $0xc] sm:$0xf]
        %v335 = vld [vmem:[%s277 + $0x10] sm:$0xf]
        %v336 = vld [vmem:[%s277 + $0x14] sm:$0xf]
        %v337 = vld [vmem:[%s277 + $0x18] sm:$0xf]
        %v338 = vld [vmem:[%s277 + $0x1c] sm:$0xf]
        %v339 = vld [vmem:[%s277 + $0x20] sm:$0xf]
        %v340 = vld [vmem:[%s277 + $0x24] sm:$0xf]
        %v341 = vld [vmem:[%s277 + $0x28] sm:$0xf]
        %v342 = vld [vmem:[%s277 + $0x2c] sm:$0xf]
        %v343 = vld [vmem:[%s277 + $0x30] sm:$0xf]
        %v344 = vld [vmem:[%s277 + $0x34] sm:$0xf]
        %v345 = vld [vmem:[%s277 + $0x38] sm:$0xf]
        %v346 = vld [vmem:[%s277 + $0x3c] sm:$0xf]
        %v347 = vld [vmem:[#allocation7] sm:$0xf]
        %v348 = vld [vmem:[#allocation7 + $0x4] sm:$0xf]
        %v349 = vld [vmem:[#allocation7 + $0x8] sm:$0xf]
        %v350 = vld [vmem:[#allocation7 + $0xc] sm:$0xf]
        %v351 = vld [vmem:[#allocation7 + $0x10] sm:$0xf]
        %v352 = vld [vmem:[#allocation7 + $0x14] sm:$0xf]
        %v353 = vld [vmem:[#allocation7 + $0x18] sm:$0xf]
        %v354 = vld [vmem:[#allocation7 + $0x1c] sm:$0xf]
        %v355 = vld [vmem:[#allocation7 + $0x20] sm:$0xf]
        %v356 = vld [vmem:[#allocation7 + $0x24] sm:$0xf]
        %v357 = vld [vmem:[#allocation7 + $0x28] sm:$0xf]
        %v358 = vld [vmem:[#allocation7 + $0x2c] sm:$0xf]
        %v359 = vld [vmem:[#allocation7 + $0x30] sm:$0xf]
        %v360 = vld [vmem:[#allocation7 + $0x34] sm:$0xf]
        %v361 = vld [vmem:[#allocation7 + $0x38] sm:$0xf]
        %v362 = vld [vmem:[#allocation7 + $0x3c] sm:$0xf]
        %v364 = vlaneseq
        %v365 = vshrl.u32 %v364, 7
        %v366 = vsub.s32 0, %v365
        %v367 = vrot.slane %v328, %v366
        %v385 = vunpack.c.l.b16 %v331
        %v386 = vunpack.c.l.b16 %v332
        %v387 = vunpack.c.l.b16 %v333
        %v388 = vunpack.c.l.b16 %v334
        %v389 = vunpack.c.l.b16 %v335
        %v390 = vunpack.c.l.b16 %v336
        %v391 = vunpack.c.l.b16 %v337
        %v392 = vunpack.c.l.b16 %v338
        %v393 = vunpack.c.l.b16 %v339
        %v394 = vunpack.c.l.b16 %v340
        %v395 = vunpack.c.l.b16 %v341
        %v396 = vunpack.c.l.b16 %v342
        %v397 = vunpack.c.l.b16 %v343
        %v398 = vunpack.c.l.b16 %v344
        %v399 = vunpack.c.l.b16 %v345
        %v400 = vunpack.c.l.b16 %v346
        %v401 = vpack.c.b16 %v386, %v385
        %v402 = vpack.c.b16 %v388, %v387
        %v403 = vpack.c.b16 %v390, %v389
        %v404 = vpack.c.b16 %v392, %v391
        %v405 = vpack.c.b16 %v394, %v393
        %v406 = vpack.c.b16 %v396, %v395
        %v407 = vpack.c.b16 %v398, %v397
        %v408 = vpack.c.b16 %v400, %v399
        %v433 = vunpack.c.l.b16 %v347
        %v434 = vunpack.c.l.b16 %v348
        %v435 = vunpack.c.l.b16 %v349
        %v436 = vunpack.c.l.b16 %v350
        %v437 = vunpack.c.l.b16 %v351
        %v438 = vunpack.c.l.b16 %v352
        %v439 = vunpack.c.l.b16 %v353
        %v440 = vunpack.c.l.b16 %v354
        %v441 = vunpack.c.l.b16 %v355
        %v442 = vunpack.c.l.b16 %v356
        %v443 = vunpack.c.l.b16 %v357
        %v444 = vunpack.c.l.b16 %v358
        %v445 = vunpack.c.l.b16 %v359
        %v446 = vunpack.c.l.b16 %v360
        %v447 = vunpack.c.l.b16 %v361
        %v448 = vunpack.c.l.b16 %v362
        %v449 = vpack.c.b16 %v434, %v433
        %v450 = vpack.c.b16 %v436, %v435
        %v451 = vpack.c.b16 %v438, %v437
        %v452 = vpack.c.b16 %v440, %v439
        %v453 = vpack.c.b16 %v442, %v441
        %v454 = vpack.c.b16 %v444, %v443
        %v455 = vpack.c.b16 %v446, %v445
        %v456 = vpack.c.b16 %v448, %v447
        %465 = vmatprep.subr.bf16.mxu0 0
        %466 = vmatpush1.bf16.msra.mxu0 %v456
        %467 = vmatprep.subr.bf16.mxu0 0
        %468 = vmatpush1.bf16.msra.mxu0 %v455
        %469 = vmatprep.subr.bf16.mxu0 0
        %470 = vmatpush1.bf16.msra.mxu0 %v454
        %471 = vmatprep.subr.bf16.mxu0 0
        %472 = vmatpush1.bf16.msra.mxu0 %v453
        %473 = vmatprep.subr.bf16.mxu0 0
        %474 = vmatpush1.bf16.msra.mxu0 %v452
        %475 = vmatprep.subr.bf16.mxu0 0
        %476 = vmatpush1.bf16.msra.mxu0 %v451
        %477 = vmatprep.subr.bf16.mxu0 0
        %478 = vmatpush1.bf16.msra.mxu0 %v450
        %479 = vmatprep.subr.bf16.mxu0 0
        %480 = vmatpush1.bf16.msra.mxu0 %v449
        %481 = vmatprep.subr.bf16.mxu0 0
        %482 = vmatpush2.bf16.msra.mxu0 0
        %483 = vmatprep.subr.bf16.mxu0 0
        %484 = vmatpush2.bf16.msra.mxu0 0
        %485 = vmatprep.subr.bf16.mxu0 0
        %486 = vmatpush2.bf16.msra.mxu0 0
        %487 = vmatprep.subr.bf16.mxu0 0
        %488 = vmatpush2.bf16.msra.mxu0 0
        %489 = vmatprep.subr.bf16.mxu0 0
        %490 = vmatpush2.bf16.msra.mxu0 0
        %491 = vmatprep.subr.bf16.mxu0 0
        %492 = vmatpush2.bf16.msra.mxu0 0
        %493 = vmatprep.subr.bf16.mxu0 0
        %494 = vmatpush2.bf16.msra.mxu0 0
        %495 = vmatprep.subr.bf16.mxu0 0
        %496 = vmatpush2.bf16.msra.mxu0 0
        %497 = vmatprep.mubr.bf16.mxu0 0
        %498 = vmatmul.mubr.bf16.gmra.mxu0 %v401
        %v499 = vpop.f32.mrf.mxu0
        %v500 = vadd.f32 %v367, %v499
        %v501 = vpop.f32.mrf.mxu0
        %v502 = vpop.f32.mrf.mxu0
        %v503 = vadd.f32 %v367, %v502
        %v504 = vpop.f32.mrf.mxu0
        %505 = vmatprep.mubr.bf16.mxu0 0
        %506 = vmatmul.mubr.bf16.gmra.mxu0 %v402
        %v507 = vpop.f32.mrf.mxu0
        %v508 = vadd.f32 %v367, %v507
        %v509 = vpop.f32.mrf.mxu0
        %v510 = vpop.f32.mrf.mxu0
        %v511 = vadd.f32 %v367, %v510
        %v512 = vpop.f32.mrf.mxu0
        %513 = vmatprep.mubr.bf16.mxu0 0
        %514 = vmatmul.mubr.bf16.gmra.mxu0 %v403
        %v515 = vpop.f32.mrf.mxu0
        %v516 = vadd.f32 %v367, %v515
        %v517 = vpop.f32.mrf.mxu0
        %v518 = vpop.f32.mrf.mxu0
        %v519 = vadd.f32 %v367, %v518
        %v520 = vpop.f32.mrf.mxu0
        %521 = vmatprep.mubr.bf16.mxu0 0
        %522 = vmatmul.mubr.bf16.gmra.mxu0 %v404
        %v523 = vpop.f32.mrf.mxu0
        %v524 = vadd.f32 %v367, %v523
        %v525 = vpop.f32.mrf.mxu0
        %v526 = vpop.f32.mrf.mxu0
        %v527 = vadd.f32 %v367, %v526
        %v528 = vpop.f32.mrf.mxu0
        %529 = vmatprep.mubr.bf16.mxu0 0
        %530 = vmatmul.mubr.bf16.gmra.mxu0 %v405
        %v531 = vpop.f32.mrf.mxu0
        %v532 = vadd.f32 %v367, %v531
        %v533 = vpop.f32.mrf.mxu0
        %v534 = vpop.f32.mrf.mxu0
        %v535 = vadd.f32 %v367, %v534
        %v536 = vpop.f32.mrf.mxu0
        %537 = vmatprep.mubr.bf16.mxu0 0
        %538 = vmatmul.mubr.bf16.gmra.mxu0 %v406
        %v539 = vpop.f32.mrf.mxu0
        %v540 = vadd.f32 %v367, %v539
        %v541 = vpop.f32.mrf.mxu0
        %v542 = vpop.f32.mrf.mxu0
        %v543 = vadd.f32 %v367, %v542
        %v544 = vpop.f32.mrf.mxu0
        %545 = vmatprep.mubr.bf16.mxu0 0
        %546 = vmatmul.mubr.bf16.gmra.mxu0 %v407
        %v547 = vpop.f32.mrf.mxu0
        %v548 = vadd.f32 %v367, %v547
        %v549 = vpop.f32.mrf.mxu0
        %v550 = vpop.f32.mrf.mxu0
        %v551 = vadd.f32 %v367, %v550
        %v552 = vpop.f32.mrf.mxu0
        %553 = vmatprep.mubr.bf16.mxu0 0
        %554 = vmatmul.mubr.bf16.gmra.mxu0 %v408
        %v555 = vpop.f32.mrf.mxu0
        %v556 = vadd.f32 %v367, %v555
        %v557 = vpop.f32.mrf.mxu0
        %v558 = vpop.f32.mrf.mxu0
        %v559 = vadd.f32 %v367, %v558
        %v560 = vpop.f32.mrf.mxu0
        %561 = vdwg.mxu0
        %v562 = vld [vmem:[%s286] sm:$0xff]
        %v563 = vld [vmem:[%s286 + $0x8] sm:$0xff]
        %v564 = vld [vmem:[%s286 + $0x10] sm:$0xff]
        %v565 = vld [vmem:[%s286 + $0x18] sm:$0xff]
        %v566 = vld [vmem:[%s286 + $0x20] sm:$0xff]
        %v567 = vld [vmem:[%s286 + $0x28] sm:$0xff]
        %v568 = vld [vmem:[%s286 + $0x30] sm:$0xff]
        %v569 = vld [vmem:[%s286 + $0x38] sm:$0xff]
        %v570 = vld [vmem:[%s286 + $0x40] sm:$0xff]
        %v571 = vld [vmem:[%s286 + $0x48] sm:$0xff]
        %v572 = vld [vmem:[%s286 + $0x50] sm:$0xff]
        %v573 = vld [vmem:[%s286 + $0x58] sm:$0xff]
        %v574 = vld [vmem:[%s286 + $0x60] sm:$0xff]
        %v575 = vld [vmem:[%s286 + $0x68] sm:$0xff]
        %v576 = vld [vmem:[%s286 + $0x70] sm:$0xff]
        %v577 = vld [vmem:[%s286 + $0x78] sm:$0xff]
        %v578 = vadd.f32 %v500, %v562
        %v579 = vadd.f32 %v503, %v563
        %v580 = vadd.f32 %v508, %v564
        %v581 = vadd.f32 %v511, %v565
        %v582 = vadd.f32 %v516, %v566
        %v583 = vadd.f32 %v519, %v567
        %v584 = vadd.f32 %v524, %v568
        %v585 = vadd.f32 %v527, %v569
        %v586 = vadd.f32 %v532, %v570
        %v587 = vadd.f32 %v535, %v571
        %v588 = vadd.f32 %v540, %v572
        %v589 = vadd.f32 %v543, %v573
        %v590 = vadd.f32 %v548, %v574
        %v591 = vadd.f32 %v551, %v575
        %v592 = vadd.f32 %v556, %v576
        %v593 = vadd.f32 %v559, %v577
        %594 = vadd.xlane.f32.xlu0 %v578
        %v595 = vpop.xlane.xlu0 %594
        %596 = vadd.xlane.f32.xlu0 %v579
        %v597 = vpop.xlane.xlu0 %596
        %598 = vadd.xlane.f32.xlu0 %v580
        %v599 = vpop.xlane.xlu0 %598
        %600 = vadd.xlane.f32.xlu0 %v581
        %v601 = vpop.xlane.xlu0 %600
        %602 = vadd.xlane.f32.xlu0 %v582
        %v603 = vpop.xlane.xlu0 %602
        %604 = vadd.xlane.f32.xlu0 %v583
        %v605 = vpop.xlane.xlu0 %604
        %606 = vadd.xlane.f32.xlu0 %v584
        %v607 = vpop.xlane.xlu0 %606
        %608 = vadd.xlane.f32.xlu0 %v585
        %v609 = vpop.xlane.xlu0 %608
        %610 = vadd.xlane.f32.xlu0 %v586
        %v611 = vpop.xlane.xlu0 %610
        %612 = vadd.xlane.f32.xlu0 %v587
        %v613 = vpop.xlane.xlu0 %612
        %614 = vadd.xlane.f32.xlu0 %v588
        %v615 = vpop.xlane.xlu0 %614
        %616 = vadd.xlane.f32.xlu0 %v589
        %v617 = vpop.xlane.xlu0 %616
        %618 = vadd.xlane.f32.xlu0 %v590
        %v619 = vpop.xlane.xlu0 %618
        %620 = vadd.xlane.f32.xlu0 %v591
        %v621 = vpop.xlane.xlu0 %620
        %622 = vadd.xlane.f32.xlu0 %v592
        %v623 = vpop.xlane.xlu0 %622
        %624 = vadd.xlane.f32.xlu0 %v593
        %v625 = vpop.xlane.xlu0 %624
        %v626 = vmul.f32 %v595, 0.03125
        %v627 = vmul.f32 %v597, 0.03125
        %v628 = vmul.f32 %v599, 0.03125
        %v629 = vmul.f32 %v601, 0.03125
        %v630 = vmul.f32 %v603, 0.03125
        %v631 = vmul.f32 %v605, 0.03125
        %v632 = vmul.f32 %v607, 0.03125
        %v633 = vmul.f32 %v609, 0.03125
        %v634 = vmul.f32 %v611, 0.03125
        %v635 = vmul.f32 %v613, 0.03125
        %v636 = vmul.f32 %v615, 0.03125
        %v637 = vmul.f32 %v617, 0.03125
        %v638 = vmul.f32 %v619, 0.03125
        %v639 = vmul.f32 %v621, 0.03125
        %v640 = vmul.f32 %v623, 0.03125
        %v641 = vmul.f32 %v625, 0.03125
        %v642 = vsub.f32 %v578, %v626
        %v643 = vsub.f32 %v579, %v627
        %v644 = vsub.f32 %v580, %v628
        %v645 = vsub.f32 %v581, %v629
        %v646 = vsub.f32 %v582, %v630
        %v647 = vsub.f32 %v583, %v631
        %v648 = vsub.f32 %v584, %v632
        %v649 = vsub.f32 %v585, %v633
        %v650 = vsub.f32 %v586, %v634
        %v651 = vsub.f32 %v587, %v635
        %v652 = vsub.f32 %v588, %v636
        %v653 = vsub.f32 %v589, %v637
        %v654 = vsub.f32 %v590, %v638
        %v655 = vsub.f32 %v591, %v639
        %v656 = vsub.f32 %v592, %v640
        %v657 = vsub.f32 %v593, %v641
        %v658 = vmul.f32 %v642, %v642
        %v659 = vmul.f32 %v643, %v643
        %v660 = vmul.f32 %v644, %v644
        %v661 = vmul.f32 %v645, %v645
        %v662 = vmul.f32 %v646, %v646
        %v663 = vmul.f32 %v647, %v647
        %v664 = vmul.f32 %v648, %v648
        %v665 = vmul.f32 %v649, %v649
        %v666 = vmul.f32 %v650, %v650
        %v667 = vmul.f32 %v651, %v651
        %v668 = vmul.f32 %v652, %v652
        %v669 = vmul.f32 %v653, %v653
        %v670 = vmul.f32 %v654, %v654
        %v671 = vmul.f32 %v655, %v655
        %v672 = vmul.f32 %v656, %v656
        %v673 = vmul.f32 %v657, %v657
        %674 = vadd.xlane.f32.xlu0 %v658
        %v675 = vpop.xlane.xlu0 %674
        %676 = vadd.xlane.f32.xlu0 %v659
        %v677 = vpop.xlane.xlu0 %676
        %678 = vadd.xlane.f32.xlu0 %v660
        %v679 = vpop.xlane.xlu0 %678
        %680 = vadd.xlane.f32.xlu0 %v661
        %v681 = vpop.xlane.xlu0 %680
        %682 = vadd.xlane.f32.xlu0 %v662
        %v683 = vpop.xlane.xlu0 %682
        %684 = vadd.xlane.f32.xlu0 %v663
        %v685 = vpop.xlane.xlu0 %684
        %686 = vadd.xlane.f32.xlu0 %v664
        %v687 = vpop.xlane.xlu0 %686
        %688 = vadd.xlane.f32.xlu0 %v665
        %v689 = vpop.xlane.xlu0 %688
        %690 = vadd.xlane.f32.xlu0 %v666
        %v691 = vpop.xlane.xlu0 %690
        %692 = vadd.xlane.f32.xlu0 %v667
        %v693 = vpop.xlane.xlu0 %692
        %694 = vadd.xlane.f32.xlu0 %v668
        %v695 = vpop.xlane.xlu0 %694
        %696 = vadd.xlane.f32.xlu0 %v669
        %v697 = vpop.xlane.xlu0 %696
        %698 = vadd.xlane.f32.xlu0 %v670
        %v699 = vpop.xlane.xlu0 %698
        %700 = vadd.xlane.f32.xlu0 %v671
        %v701 = vpop.xlane.xlu0 %700
        %702 = vadd.xlane.f32.xlu0 %v672
        %v703 = vpop.xlane.xlu0 %702
        %704 = vadd.xlane.f32.xlu0 %v673
        %v705 = vpop.xlane.xlu0 %704
        %v706 = vmul.f32 %v626, %v626
        %v707 = vmul.f32 %v627, %v627
        %v708 = vmul.f32 %v628, %v628
        %v709 = vmul.f32 %v629, %v629
        %v710 = vmul.f32 %v630, %v630
        %v711 = vmul.f32 %v631, %v631
        %v712 = vmul.f32 %v632, %v632
        %v713 = vmul.f32 %v633, %v633
        %v714 = vmul.f32 %v634, %v634
        %v715 = vmul.f32 %v635, %v635
        %v716 = vmul.f32 %v636, %v636
        %v717 = vmul.f32 %v637, %v637
        %v718 = vmul.f32 %v638, %v638
        %v719 = vmul.f32 %v639, %v639
        %v720 = vmul.f32 %v640, %v640
        %v721 = vmul.f32 %v641, %v641
        %v722 = vmul.f32 %v706, 96.0
        %v723 = vmul.f32 %v707, 96.0
        %v724 = vmul.f32 %v708, 96.0
        %v725 = vmul.f32 %v709, 96.0
        %v726 = vmul.f32 %v710, 96.0
        %v727 = vmul.f32 %v711, 96.0
        %v728 = vmul.f32 %v712, 96.0
        %v729 = vmul.f32 %v713, 96.0
        %v730 = vmul.f32 %v714, 96.0
        %v731 = vmul.f32 %v715, 96.0
        %v732 = vmul.f32 %v716, 96.0
        %v733 = vmul.f32 %v717, 96.0
        %v734 = vmul.f32 %v718, 96.0
        %v735 = vmul.f32 %v719, 96.0
        %v736 = vmul.f32 %v720, 96.0
        %v737 = vmul.f32 %v721, 96.0
        %v738 = vsub.f32 %v675, %v722
        %v739 = vsub.f32 %v677, %v723
        %v740 = vsub.f32 %v679, %v724
        %v741 = vsub.f32 %v681, %v725
        %v742 = vsub.f32 %v683, %v726
        %v743 = vsub.f32 %v685, %v727
        %v744 = vsub.f32 %v687, %v728
        %v745 = vsub.f32 %v689, %v729
        %v746 = vsub.f32 %v691, %v730
        %v747 = vsub.f32 %v693, %v731
        %v748 = vsub.f32 %v695, %v732
        %v749 = vsub.f32 %v697, %v733
        %v750 = vsub.f32 %v699, %v734
        %v751 = vsub.f32 %v701, %v735
        %v752 = vsub.f32 %v703, %v736
        %v753 = vsub.f32 %v705, %v737
        %v754 = vmul.f32 %v738, 0.03125
        %v755 = vmul.f32 %v739, 0.03125
        %v756 = vmul.f32 %v740, 0.03125
        %v757 = vmul.f32 %v741, 0.03125
        %v758 = vmul.f32 %v742, 0.03125
        %v759 = vmul.f32 %v743, 0.03125
        %v760 = vmul.f32 %v744, 0.03125
        %v761 = vmul.f32 %v745, 0.03125
        %v762 = vmul.f32 %v746, 0.03125
        %v763 = vmul.f32 %v747, 0.03125
        %v764 = vmul.f32 %v748, 0.03125
        %v765 = vmul.f32 %v749, 0.03125
        %v766 = vmul.f32 %v750, 0.03125
        %v767 = vmul.f32 %v751, 0.03125
        %v768 = vmul.f32 %v752, 0.03125
        %v769 = vmul.f32 %v753, 0.03125
        %v770 = vadd.f32 %v754, 1e-12
        %v771 = vadd.f32 %v755, 1e-12
        %v772 = vadd.f32 %v756, 1e-12
        %v773 = vadd.f32 %v757, 1e-12
        %v774 = vadd.f32 %v758, 1e-12
        %v775 = vadd.f32 %v759, 1e-12
        %v776 = vadd.f32 %v760, 1e-12
        %v777 = vadd.f32 %v761, 1e-12
        %v778 = vadd.f32 %v762, 1e-12
        %v779 = vadd.f32 %v763, 1e-12
        %v780 = vadd.f32 %v764, 1e-12
        %v781 = vadd.f32 %v765, 1e-12
        %v782 = vadd.f32 %v766, 1e-12
        %v783 = vadd.f32 %v767, 1e-12
        %v784 = vadd.f32 %v768, 1e-12
        %v785 = vadd.f32 %v769, 1e-12
        %v786 = vrsqrt.pop %v770
        %v787 = vrsqrt.pop %v771
        %v788 = vrsqrt.pop %v772
        %v789 = vrsqrt.pop %v773
        %v790 = vrsqrt.pop %v774
        %v791 = vrsqrt.pop %v775
        %v792 = vrsqrt.pop %v776
        %v793 = vrsqrt.pop %v777
        %v794 = vrsqrt.pop %v778
        %v795 = vrsqrt.pop %v779
        %v796 = vrsqrt.pop %v780
        %v797 = vrsqrt.pop %v781
        %v798 = vrsqrt.pop %v782
        %v799 = vrsqrt.pop %v783
        %v800 = vrsqrt.pop %v784
        %v801 = vrsqrt.pop %v785
        %v802 = vmul.f32 %v642, %v786
        %v803 = vmul.f32 %v643, %v787
        %v804 = vmul.f32 %v644, %v788
        %v805 = vmul.f32 %v645, %v789
        %v806 = vmul.f32 %v646, %v790
        %v807 = vmul.f32 %v647, %v791
        %v808 = vmul.f32 %v648, %v792
        %v809 = vmul.f32 %v649, %v793
        %v810 = vmul.f32 %v650, %v794
        %v811 = vmul.f32 %v651, %v795
        %v812 = vmul.f32 %v652, %v796
        %v813 = vmul.f32 %v653, %v797
        %v814 = vmul.f32 %v654, %v798
        %v815 = vmul.f32 %v655, %v799
        %v816 = vmul.f32 %v656, %v800
        %v817 = vmul.f32 %v657, %v801
        %v819 = vlaneseq
        %v820 = vshrl.u32 %v819, 7
        %v821 = vsub.s32 0, %v820
        %v822 = vrot.slane %v329, %v821
        %v824 = vmul.f32 %v802, %v822
        %v825 = vmul.f32 %v803, %v822
        %v826 = vmul.f32 %v804, %v822
        %v827 = vmul.f32 %v805, %v822
        %v828 = vmul.f32 %v806, %v822
        %v829 = vmul.f32 %v807, %v822
        %v830 = vmul.f32 %v808, %v822
        %v831 = vmul.f32 %v809, %v822
        %v832 = vmul.f32 %v810, %v822
        %v833 = vmul.f32 %v811, %v822
        %v834 = vmul.f32 %v812, %v822
        %v835 = vmul.f32 %v813, %v822
        %v836 = vmul.f32 %v814, %v822
        %v837 = vmul.f32 %v815, %v822
        %v838 = vmul.f32 %v816, %v822
        %v839 = vmul.f32 %v817, %v822
        %v841 = vlaneseq
        %v842 = vshrl.u32 %v841, 7
        %v843 = vsub.s32 0, %v842
        %v844 = vrot.slane %v330, %v843
        %v846 = vadd.f32 %v824, %v844
        %v847 = vadd.f32 %v825, %v844
        %v848 = vadd.f32 %v826, %v844
        %v849 = vadd.f32 %v827, %v844
        %v850 = vadd.f32 %v828, %v844
        %v851 = vadd.f32 %v829, %v844
        %v852 = vadd.f32 %v830, %v844
        %v853 = vadd.f32 %v831, %v844
        %v854 = vadd.f32 %v832, %v844
        %v855 = vadd.f32 %v833, %v844
        %v856 = vadd.f32 %v834, %v844
        %v857 = vadd.f32 %v835, %v844
        %v858 = vadd.f32 %v836, %v844
        %v859 = vadd.f32 %v837, %v844
        %v860 = vadd.f32 %v838, %v844
        %v861 = vadd.f32 %v839, %v844
        %862 = vst [vmem:[%s323] sm:$0xff] %v846
        %863 = vst [vmem:[%s323 + $0x8] sm:$0xff] %v847
        %864 = vst [vmem:[%s323 + $0x10] sm:$0xff] %v848
        %865 = vst [vmem:[%s323 + $0x18] sm:$0xff] %v849
        %866 = vst [vmem:[%s323 + $0x20] sm:$0xff] %v850
        %867 = vst [vmem:[%s323 + $0x28] sm:$0xff] %v851
        %868 = vst [vmem:[%s323 + $0x30] sm:$0xff] %v852
        %869 = vst [vmem:[%s323 + $0x38] sm:$0xff] %v853
        %870 = vst [vmem:[%s323 + $0x40] sm:$0xff] %v854
        %871 = vst [vmem:[%s323 + $0x48] sm:$0xff] %v855
        %872 = vst [vmem:[%s323 + $0x50] sm:$0xff] %v856
        %873 = vst [vmem:[%s323 + $0x58] sm:$0xff] %v857
        %874 = vst [vmem:[%s323 + $0x60] sm:$0xff] %v858
        %875 = vst [vmem:[%s323 + $0x68] sm:$0xff] %v859
        %876 = vst [vmem:[%s323 + $0x70] sm:$0xff] %v860
        %877 = vst [vmem:[%s323 + $0x78] sm:$0xff] %v861
        %s878 = sand.u32 %s170, 1
        %s879 = scalar_lea.sflag [#allocation4], %s878
        %s880 = sand.u32 %s170, 1
        %s881 = smul.addr %s880, 128
        %s882 = scalar_lea.vmem [#allocation8], %s881
        // Predicated region
        $region57: #{tpu_custom_call.1} parent=43 // pred_check
          %p883 = pneg %p180
        $region58: #{tpu_custom_call.1} parent=43 // pred_check_branch
          %885 = sbr.rel (%p883) target = $region60
        $region59: #{tpu_custom_call.1} parent=43 // pred_region
          %s886 = smul.u32 16, %s26
          %s888 = ssub.s32 2048, 2048
          %889 = vsyncadd %s879, %s888
          %s890 = smul.addr %s886, 128
          %s891 = scalar_lea.hbm %s6, %s890
          %s892 = sshll.u32 %s882, 4
          %s893 = int_to_ptr.vmem [resolvable:$true] %s892
          %898 = dma.vmem_to_hbm [thread:$0]  %s893, 2048, %s891, %s879, 128, 128, 8
        $region60: #{tpu_custom_call.1} parent=43 // pred_fallthru
          _
      $region44: #{tpu_custom_call.1} parent=5 // pred_fallthru
        _
      %p899 = scmp.le.s32.totalorder 2, %s21
      // Predicated region
      $region61: #{tpu_custom_call.1} parent=5 // pred_check
        %p900 = pneg %p899
      $region62: #{tpu_custom_call.1} parent=5 // pred_check_branch
        %902 = sbr.rel (%p900) target = $region64
      $region63: #{tpu_custom_call.1} parent=5 // pred_region
        %s903 = ssub.s32 %s21, 2
        // Predicated region
        $region65: #{tpu_custom_call.1} parent=63 // pred_check
          %p904 = pneg %p186
        $region66: #{tpu_custom_call.1} parent=63 // pred_check_branch
          %906 = sbr.rel (%p904) target = $region68
        $region67: #{tpu_custom_call.1} parent=63 // pred_region
          %s907 = sand.u32 %s171, 1
          %s908 = scalar_lea.sflag [#allocation4], %s907
          %s909 = sand.u32 %s171, 1
          %s910 = smul.addr %s909, 128
          %s911 = scalar_lea.vmem [#allocation8], %s910
          %912 = dma.done %s908, 2048
        $region68: #{tpu_custom_call.1} parent=63 // pred_fallthru
          _
      $region64: #{tpu_custom_call.1} parent=5 // pred_fallthru
        _
    $region6: #{tpu_custom_call.1} parent=1 // loop_footer
      %s25 = sadd.s32 1, %s21
    $region7: #{tpu_custom_call.1} parent=1 // loop_footer_branch
      %20 = sbr.rel target = $region3
    $region8: #{tpu_custom_call.1} parent=1 // loop_exit
      _
    %913 = vsyncpa [#allocation3], 1
    %s914 = scalar_lea.sflag [#allocation3], 1
    %915 = vsyncpa %s914, 1
    %916 = vsyncpa [#allocation6], 1
    %s917 = scalar_lea.sflag [#allocation6], 1
    %918 = vsyncpa %s917, 1
    %919 = vsyncpa [#allocation4], 1
    %s920 = scalar_lea.sflag [#allocation4], 1
    %921 = vsyncpa %s920, 1

</llo_original>
